<compile_context>
chip_gen: v6e
topology: v6e:2x2x1
jax: 0.10.0
libtpu: 0.0.40
codegen_flags: <defaults>
</compile_context>

<pallas_src>
import functools

import jax
import jax.numpy as jnp
from jax.experimental import pallas as pl
from jax.experimental.pallas import tpu as pltpu


def _round_up(x, m):
    return ((x + m - 1) // m) * m


def _linear_magphase_tiled_kernel(x_ref, w_ref, b_ref, o_ref, acc_ref):
    # x_ref: (tm, tk), w_ref: (tk, tn), b_ref: (1, tn), o_ref: (tm, tn)
    # acc_ref: (tm, tn) f32 scratch, resident across the K axis.
    k = pl.program_id(3)

    @pl.when(k == 0)
    def _():
        acc_ref[...] = jnp.zeros_like(acc_ref)

    acc_ref[...] += jnp.dot(
        x_ref[...], w_ref[...], preferred_element_type=jnp.float32)

    @pl.when(k == pl.num_programs(3) - 1)
    def _():
        o_ref[...] = (acc_ref[...] + b_ref[...].astype(jnp.float32)).astype(
            o_ref.dtype)


def _linear_magphase_fused_kernel(x_ref, w_ref, b_ref, o_ref):
    # Tiny-problem path: whole (padded) operands live in VMEM; one kernel step
    # computes both components so the two dots share one scheduled region and
    # we pay no per-grid-step overhead.
    for c in range(2):  # static unroll over the component axis
        acc = jnp.dot(x_ref[c], w_ref[c], preferred_element_type=jnp.float32)
        o_ref[c] = (acc + b_ref[c].astype(jnp.float32)).astype(o_ref.dtype)


@functools.partial(jax.jit, static_argnames=("compute_dtype",))
def linear_mag_phase(x, weight, bias, *, compute_dtype=None):
    """x: (2, B, Fin); weight: (2, Fin, Fout); bias: (2, Fout) -> (2, B, Fout).

    compute_dtype: optional dtype (e.g. jnp.bfloat16) to cast x/weight to for
    the MXU matmul (accumulation stays f32). Output keeps x's original dtype.
    """
    two, B, Fin = x.shape
    assert two == 2
    assert weight.shape[0] == 2 and weight.shape[1] == Fin
    Fout = weight.shape[-1]
    out_dtype = x.dtype

    if compute_dtype is not None:
        x = x.astype(compute_dtype)
        weight = weight.astype(compute_dtype)

    # Tile sizes: M tile sublane-aligned (mult of 8); N/K tiles lane-dense
    # (mult of 128).  Capped so double-buffered tiles stay small even on
    # v7x's 64 MiB VMEM.
    tm = min(_round_up(B, 8), 256)
    tn = min(_round_up(Fout, 128), 512)
    tk = min(_round_up(Fin, 128), 512)

    Bp = _round_up(B, tm)
    Fip = _round_up(Fin, tk)
    Fop = _round_up(Fout, tn)

    # Zero-pad to tile multiples (padded K contributes zeros -> exact result;
    # padded M/N rows/cols are sliced off below).
    xp = jnp.pad(x, ((0, 0), (0, Bp - B), (0, Fip - Fin)))
    wp = jnp.pad(weight, ((0, 0), (0, Fip - Fin), (0, Fop - Fout)))
    bp = jnp.pad(bias, ((0, 0), (0, Fop - Fout))).reshape(2, 1, Fop)

    grid_m, grid_n, grid_k = Bp // tm, Fop // tn, Fip // tk

    # VMEM budget: double-buffered input/output tiles + f32 accumulator, with
    # 2x headroom, capped well under v7x's 64 MiB physical VMEM.
    in_itm = jnp.dtype(xp.dtype).itemsize
    out_itm = jnp.dtype(out_dtype).itemsize
    vmem_est = (2 * tm * tk * in_itm       # x tiles
                + 2 * tk * tn * in_itm     # w tiles
                + 2 * tn * 4               # bias tiles
                + 2 * tm * tn * out_itm    # out tiles
                + tm * tn * 4)             # accumulator scratch
    vmem_limit = int(min(max(2 * vmem_est, 16 * 2**20), 48 * 2**20))

    if grid_m == 1 and grid_n == 1 and grid_k == 1:
        # Whole problem is a single tile per component -> fused single-step kernel.
        out = pl.pallas_call(
            _linear_magphase_fused_kernel,
            out_shape=jax.ShapeDtypeStruct((2, Bp, Fop), out_dtype),
            compiler_params=pltpu.CompilerParams(
                vmem_limit_bytes=vmem_limit),
        )(xp, wp, bp)
    else:
        out = pl.pallas_call(
            _linear_magphase_tiled_kernel,
            out_shape=jax.ShapeDtypeStruct((2, Bp, Fop), out_dtype),
            grid_spec=pltpu.PrefetchScalarGridSpec(
                num_scalar_prefetch=0,
                grid=(2, grid_m, grid_n, grid_k),
                in_specs=[
                    pl.BlockSpec((pl.Squeezed(), tm, tk),
                                 lambda c, i, j, k: (c, i, k)),
                    pl.BlockSpec((pl.Squeezed(), tk, tn),
                                 lambda c, i, j, k: (c, k, j)),
                    pl.BlockSpec((pl.Squeezed(), 1, tn),
                                 lambda c, i, j, k: (c, 0, j)),
                ],
                out_specs=pl.BlockSpec((pl.Squeezed(), tm, tn),
                                       lambda c, i, j, k: (c, i, j)),
                scratch_shapes=[pltpu.VMEM((tm, tn), jnp.float32)],
            ),
            compiler_params=pltpu.CompilerParams(
                dimension_semantics=(
                    "parallel", "parallel", "parallel", "arbitrary"),
                vmem_limit_bytes=vmem_limit),
        )(xp, wp, bp)

    return out[:, :B, :Fout]


def init_params(key, input_features, output_features):
    """Deterministic init mimicking nn.Linear defaults (uniform +/- 1/sqrt(fan_in)).

    Weights are stored pre-transposed as (2, Fin, Fout); a PyTorch state_dict
    weight of shape (Fout, Fin) would be transposed before stacking.
    """
    kw, kb = jax.random.split(key)
    bound = 1.0 / (input_features ** 0.5)
    weight = jax.random.uniform(
        kw, (2, input_features, output_features), jnp.float32,
        minval=-bound, maxval=bound)
    bias = jax.random.uniform(
        kb, (2, output_features), jnp.float32, minval=-bound, maxval=bound)
    return weight, bias


if __name__ == "__main__":
    key = jax.random.PRNGKey(0)
    k_x, k_p, k_x2, k_p2 = jax.random.split(key, 4)

    # --- Small demo shape (exercises the fused single-step path). ---
    batch, fin, fout = 8, 32, 32
    x = jax.random.normal(k_x, (2, batch, fin), jnp.float32)
    weight, bias = init_params(k_p, fin, fout)

    out = jax.block_until_ready(linear_mag_phase(x, weight, bias))
    ref = jnp.stack(
        [x[0] @ weight[0] + bias[0], x[1] @ weight[1] + bias[1]], axis=0)
    assert out.shape == (2, batch, fout)
    assert jnp.allclose(out, ref, atol=1e-5, rtol=1e-5)

    # --- Larger shape: exercises the tiled path incl. the K-reduction loop. ---
    batch2, fin2, fout2 = 40, 640, 192
    x2 = jax.random.normal(k_x2, (2, batch2, fin2), jnp.float32)
    w2, b2 = init_params(k_p2, fin2, fout2)
    out2 = jax.block_until_ready(linear_mag_phase(x2, w2, b2))
    ref2 = jnp.stack([x2[0] @ w2[0] + b2[0], x2[1] @ w2[1] + b2[1]], axis=0)
    assert out2.shape == (2, batch2, fout2)
    assert jnp.allclose(out2, ref2, atol=1e-4, rtol=1e-4)

    # --- bf16 compute path (mem-bound optimization); looser tolerance. ---
    out_bf16 = jax.block_until_ready(
        linear_mag_phase(x2, w2, b2, compute_dtype=jnp.bfloat16))
    assert jnp.allclose(out_bf16, ref2, atol=5e-2, rtol=5e-2)

    print("KERNEL_OK")
</pallas_src>

<mosaic_0001>
module attributes {stable_mosaic.version = 11 : i64} {
  func.func @_linear_magphase_fused_kernel(%arg0: memref<2x8x128xf32, #tpu.memory_space<vmem>>, %arg1: memref<2x128x128xf32, #tpu.memory_space<vmem>>, %arg2: memref<2x1x128xf32, #tpu.memory_space<vmem>>, %arg3: memref<2x8x128xf32, #tpu.memory_space<vmem>>) attributes {dimension_semantics = [], scalar_prefetch = 0 : i64, scratch_operands = 0 : i64, tpu.core_type = #tpu.core_type<tc>} {
    %c0 = arith.constant 0 : index
    %c0_0 = arith.constant 0 : index
    %c0_1 = arith.constant 0 : index
    %0 = vector.load %arg0[%c0, %c0_0, %c0_1] : memref<2x8x128xf32, #tpu.memory_space<vmem>>, vector<1x8x128xf32>
    %1 = vector.shape_cast %0 : vector<1x8x128xf32> to vector<8x128xf32>
    %c0_2 = arith.constant 0 : index
    %c0_3 = arith.constant 0 : index
    %c0_4 = arith.constant 0 : index
    %2 = vector.load %arg1[%c0_2, %c0_3, %c0_4] : memref<2x128x128xf32, #tpu.memory_space<vmem>>, vector<1x128x128xf32>
    %3 = vector.shape_cast %2 : vector<1x128x128xf32> to vector<128x128xf32>
    %cst = arith.constant dense<0.000000e+00> : vector<8x128xf32>
    %4 = tpu.matmul %1, %3, %cst {dimension_numbers = #tpu.dot_dimension_numbers<[1], [0], [0], [1], [0, 0, 1, 1], [], []>} : vector<8x128xf32>, vector<128x128xf32>, vector<8x128xf32> -> vector<8x128xf32>
    %c0_5 = arith.constant 0 : index
    %c0_6 = arith.constant 0 : index
    %c0_7 = arith.constant 0 : index
    %5 = vector.load %arg2[%c0_5, %c0_6, %c0_7] : memref<2x1x128xf32, #tpu.memory_space<vmem>>, vector<1x1x128xf32>
    %6 = vector.shape_cast %5 : vector<1x1x128xf32> to vector<1x128xf32>
    %7 = vector.broadcast %6 : vector<1x128xf32> to vector<8x128xf32>
    %8 = arith.addf %4, %7 : vector<8x128xf32>
    %c0_8 = arith.constant 0 : index
    %c0_9 = arith.constant 0 : index
    %c0_10 = arith.constant 0 : index
    %9 = vector.load %arg3[%c0_8, %c0_9, %c0_10] : memref<2x8x128xf32, #tpu.memory_space<vmem>>, vector<1x8x128xf32>
    %10 = vector.shape_cast %9 : vector<1x8x128xf32> to vector<8x128xf32>
    %11 = vector.shape_cast %8 : vector<8x128xf32> to vector<1x8x128xf32>
    tpu.vector_store %arg3[%c0_8, %c0_9, %c0_10], %11 {strides = array<i32>} : memref<2x8x128xf32, #tpu.memory_space<vmem>>, vector<1x8x128xf32>,
    %c1 = arith.constant 1 : index
    %c0_11 = arith.constant 0 : index
    %c0_12 = arith.constant 0 : index
    %12 = vector.load %arg0[%c1, %c0_11, %c0_12] : memref<2x8x128xf32, #tpu.memory_space<vmem>>, vector<1x8x128xf32>
    %13 = vector.shape_cast %12 : vector<1x8x128xf32> to vector<8x128xf32>
    %c1_13 = arith.constant 1 : index
    %c0_14 = arith.constant 0 : index
    %c0_15 = arith.constant 0 : index
    %14 = vector.load %arg1[%c1_13, %c0_14, %c0_15] : memref<2x128x128xf32, #tpu.memory_space<vmem>>, vector<1x128x128xf32>
    %15 = vector.shape_cast %14 : vector<1x128x128xf32> to vector<128x128xf32>
    %cst_16 = arith.constant dense<0.000000e+00> : vector<8x128xf32>
    %16 = tpu.matmul %13, %15, %cst_16 {dimension_numbers = #tpu.dot_dimension_numbers<[1], [0], [0], [1], [0, 0, 1, 1], [], []>} : vector<8x128xf32>, vector<128x128xf32>, vector<8x128xf32> -> vector<8x128xf32>
    %c1_17 = arith.constant 1 : index
    %c0_18 = arith.constant 0 : index
    %c0_19 = arith.constant 0 : index
    %17 = vector.load %arg2[%c1_17, %c0_18, %c0_19] : memref<2x1x128xf32, #tpu.memory_space<vmem>>, vector<1x1x128xf32>
    %18 = vector.shape_cast %17 : vector<1x1x128xf32> to vector<1x128xf32>
    %19 = vector.broadcast %18 : vector<1x128xf32> to vector<8x128xf32>
    %20 = arith.addf %16, %19 : vector<8x128xf32>
    %c1_20 = arith.constant 1 : index
    %c0_21 = arith.constant 0 : index
    %c0_22 = arith.constant 0 : index
    %21 = vector.load %arg3[%c1_20, %c0_21, %c0_22] : memref<2x8x128xf32, #tpu.memory_space<vmem>>, vector<1x8x128xf32>
    %22 = vector.shape_cast %21 : vector<1x8x128xf32> to vector<8x128xf32>
    %23 = vector.shape_cast %20 : vector<8x128xf32> to vector<1x8x128xf32>
    tpu.vector_store %arg3[%c1_20, %c0_21, %c0_22], %23 {strides = array<i32>} : memref<2x8x128xf32, #tpu.memory_space<vmem>>, vector<1x8x128xf32>,
    return
  }
}

</mosaic_0001>

<llo_original>
// kernel: linear_mag_phase.1
$region0: #{linear_mag_phase.1}
  #allocation0 [shape = 'u32[]', space=smem, size = 0x4, offset = 0x4, fixed_abs, tag = 'smem constant byte address 0x4 - core index']
  #allocation1 [shape = 'u32[144,128]{1,0:T(1,128)}', space=vmem, size = 0x12000, scoped, tag = 'internal scratch']
  %s0 = inlined_call_operand.vmem [shape: f32[2,8,128], index: 0, kind: input, shape index: {}]
  %s1 = inlined_call_operand.vmem [shape: f32[2,128,128], index: 1, kind: input, shape index: {}]
  %s2 = inlined_call_operand.vmem [shape: f32[2,1,128], index: 2, kind: input, shape index: {}]
  %s3 = inlined_call_operand.hbm [shape: f32[2,8,128], index: 3, kind: output, shape index: {}]
  %s4 = sld [smem:[#allocation0]]
  $region22: #{linear_mag_phase.1} parent=0
    _
  %s6 = ssub.s32 1, %s4
  %s7 = scalar_select 0, %s6, %s4
  $region1: #{linear_mag_phase.1} parent=0
    #allocation2 [shape = 'u8[8192]{0}', space=vmem, size = 0x2000, scoped, tag = 'output window, operand 0, single buffered']
    #allocation3 [shape = 's32[1]{0}', space=sflag, size = 0x4, scoped, tag = 'scoped memory for linear_mag_phase.1']
    %8 = vsyncpa [#allocation3], 0
    // Predicated region
    $region2: #{linear_mag_phase.1} parent=1 // pred_check
      _
    $region3: #{linear_mag_phase.1} parent=1 // pred_check_branch
      %10 = sbr.rel (0) target = $region5
    $region4: #{linear_mag_phase.1} parent=1 // pred_region
      _
    $region5: #{linear_mag_phase.1} parent=1 // pred_fallthru
      _
    // Predicated region
    $region6: #{linear_mag_phase.1} parent=1 // pred_check
      _
    $region7: #{linear_mag_phase.1} parent=1 // pred_check_branch
      %12 = sbr.rel (0) target = $region9
    $region8: #{linear_mag_phase.1} parent=1 // pred_region
      _
    $region9: #{linear_mag_phase.1} parent=1 // pred_fallthru
      _
    // Predicated region
    $region10: #{linear_mag_phase.1} parent=1 // pred_check
      _
    $region11: #{linear_mag_phase.1} parent=1 // pred_check_branch
      %14 = sbr.rel (0) target = $region13
    $region12: #{linear_mag_phase.1} parent=1 // pred_region
      _
    $region13: #{linear_mag_phase.1} parent=1 // pred_fallthru
      _
    %v15 = vld [vmem:[%s0] sm:$0xff]
    %v16 = vld [vmem:[%s1] sm:$0xff]
    %v17 = vld [vmem:[%s1 + $0x8] sm:$0xff]
    %v18 = vld [vmem:[%s1 + $0x10] sm:$0xff]
    %v19 = vld [vmem:[%s1 + $0x18] sm:$0xff]
    %v20 = vld [vmem:[%s1 + $0x20] sm:$0xff]
    %v21 = vld [vmem:[%s1 + $0x28] sm:$0xff]
    %v22 = vld [vmem:[%s1 + $0x30] sm:$0xff]
    %v23 = vld [vmem:[%s1 + $0x38] sm:$0xff]
    %v24 = vld [vmem:[%s1 + $0x40] sm:$0xff]
    %v25 = vld [vmem:[%s1 + $0x48] sm:$0xff]
    %v26 = vld [vmem:[%s1 + $0x50] sm:$0xff]
    %v27 = vld [vmem:[%s1 + $0x58] sm:$0xff]
    %v28 = vld [vmem:[%s1 + $0x60] sm:$0xff]
    %v29 = vld [vmem:[%s1 + $0x68] sm:$0xff]
    %v30 = vld [vmem:[%s1 + $0x70] sm:$0xff]
    %v31 = vld [vmem:[%s1 + $0x78] sm:$0xff]
    %v32 = vld [vmem:[%s2] sm:$0x1]
    %v34 = vlaneseq
    %v35 = vshrl.u32 %v34, 7
    %v36 = vsub.s32 0, %v35
    %v37 = vrot.slane %v32, %v36
    %39 = vmatprep.subr.mxu0 0.0
    %40 = vmatpush1.msra.mxu0 %v31
    %41 = vmatprep.subr.mxu0 0.0
    %42 = vmatpush1.msra.mxu0 %v30
    %43 = vmatprep.subr.mxu0 0.0
    %44 = vmatpush1.msra.mxu0 %v29
    %45 = vmatprep.subr.mxu0 0.0
    %46 = vmatpush1.msra.mxu0 %v28
    %47 = vmatprep.subr.mxu0 0.0
    %48 = vmatpush1.msra.mxu0 %v27
    %49 = vmatprep.subr.mxu0 0.0
    %50 = vmatpush1.msra.mxu0 %v26
    %51 = vmatprep.subr.mxu0 0.0
    %52 = vmatpush1.msra.mxu0 %v25
    %53 = vmatprep.subr.mxu0 0.0
    %54 = vmatpush1.msra.mxu0 %v24
    %55 = vmatprep.subr.mxu0 0.0
    %56 = vmatpush1.msra.mxu0 %v23
    %57 = vmatprep.subr.mxu0 0.0
    %58 = vmatpush1.msra.mxu0 %v22
    %59 = vmatprep.subr.mxu0 0.0
    %60 = vmatpush1.msra.mxu0 %v21
    %61 = vmatprep.subr.mxu0 0.0
    %62 = vmatpush1.msra.mxu0 %v20
    %63 = vmatprep.subr.mxu0 0.0
    %64 = vmatpush1.msra.mxu0 %v19
    %65 = vmatprep.subr.mxu0 0.0
    %66 = vmatpush1.msra.mxu0 %v18
    %67 = vmatprep.subr.mxu0 0.0
    %68 = vmatpush1.msra.mxu0 %v17
    %69 = vmatprep.subr.mxu0 0.0
    %70 = vmatpush1.msra.mxu0 %v16
    %71 = vmatprep.subr.mxu0 0.0
    %72 = vmatpush2.msra.mxu0 0.0
    %73 = vmatprep.subr.mxu0 0.0
    %74 = vmatpush2.msra.mxu0 0.0
    %75 = vmatprep.subr.mxu0 0.0
    %76 = vmatpush2.msra.mxu0 0.0
    %77 = vmatprep.subr.mxu0 0.0
    %78 = vmatpush2.msra.mxu0 0.0
    %79 = vmatprep.subr.mxu0 0.0
    %80 = vmatpush2.msra.mxu0 0.0
    %81 = vmatprep.subr.mxu0 0.0
    %82 = vmatpush2.msra.mxu0 0.0
    %83 = vmatprep.subr.mxu0 0.0
    %84 = vmatpush2.msra.mxu0 0.0
    %85 = vmatprep.subr.mxu0 0.0
    %86 = vmatpush2.msra.mxu0 0.0
    %87 = vmatprep.subr.mxu0 0.0
    %88 = vmatpush2.msra.mxu0 0.0
    %89 = vmatprep.subr.mxu0 0.0
    %90 = vmatpush2.msra.mxu0 0.0
    %91 = vmatprep.subr.mxu0 0.0
    %92 = vmatpush2.msra.mxu0 0.0
    %93 = vmatprep.subr.mxu0 0.0
    %94 = vmatpush2.msra.mxu0 0.0
    %95 = vmatprep.subr.mxu0 0.0
    %96 = vmatpush2.msra.mxu0 0.0
    %97 = vmatprep.subr.mxu0 0.0
    %98 = vmatpush2.msra.mxu0 0.0
    %99 = vmatprep.subr.mxu0 0.0
    %100 = vmatpush2.msra.mxu0 0.0
    %101 = vmatprep.subr.mxu0 0.0
    %102 = vmatpush2.msra.mxu0 0.0
    %103 = vmatprep.mubr.f32.mxu0 0.0
    %104 = vmatmul.mubr.f32.gmra.mxu0 %v15
    %v105 = vpop.f32.mrf.mxu0
    %v106 = vadd.f32 %v37, %v105
    %v107 = vpop.f32.mrf.mxu0
    %108 = vdwg.mxu0
    %109 = vst [vmem:[#allocation2] sm:$0xff] %v106
    %s110 = scalar_lea.vmem %s0, 8
    %v111 = vld [vmem:[%s110] sm:$0xff]
    %s112 = scalar_lea.vmem %s1, 128
    %v113 = vld [vmem:[%s112] sm:$0xff]
    %v114 = vld [vmem:[%s112 + $0x8] sm:$0xff]
    %v115 = vld [vmem:[%s112 + $0x10] sm:$0xff]
    %v116 = vld [vmem:[%s112 + $0x18] sm:$0xff]
    %v117 = vld [vmem:[%s112 + $0x20] sm:$0xff]
    %v118 = vld [vmem:[%s112 + $0x28] sm:$0xff]
    %v119 = vld [vmem:[%s112 + $0x30] sm:$0xff]
    %v120 = vld [vmem:[%s112 + $0x38] sm:$0xff]
    %v121 = vld [vmem:[%s112 + $0x40] sm:$0xff]
    %v122 = vld [vmem:[%s112 + $0x48] sm:$0xff]
    %v123 = vld [vmem:[%s112 + $0x50] sm:$0xff]
    %v124 = vld [vmem:[%s112 + $0x58] sm:$0xff]
    %v125 = vld [vmem:[%s112 + $0x60] sm:$0xff]
    %v126 = vld [vmem:[%s112 + $0x68] sm:$0xff]
    %v127 = vld [vmem:[%s112 + $0x70] sm:$0xff]
    %v128 = vld [vmem:[%s112 + $0x78] sm:$0xff]
    %s129 = scalar_lea.vmem %s2, 1
    %v130 = vld [vmem:[%s129] sm:$0x1]
    %v132 = vlaneseq
    %v133 = vshrl.u32 %v132, 7
    %v134 = vsub.s32 0, %v133
    %v135 = vrot.slane %v130, %v134
    %137 = vmatprep.subr.mxu0 0.0
    %138 = vmatpush1.msra.mxu0 %v128
    %139 = vmatprep.subr.mxu0 0.0
    %140 = vmatpush1.msra.mxu0 %v127
    %141 = vmatprep.subr.mxu0 0.0
    %142 = vmatpush1.msra.mxu0 %v126
    %143 = vmatprep.subr.mxu0 0.0
    %144 = vmatpush1.msra.mxu0 %v125
    %145 = vmatprep.subr.mxu0 0.0
    %146 = vmatpush1.msra.mxu0 %v124
    %147 = vmatprep.subr.mxu0 0.0
    %148 = vmatpush1.msra.mxu0 %v123
    %149 = vmatprep.subr.mxu0 0.0
    %150 = vmatpush1.msra.mxu0 %v122
    %151 = vmatprep.subr.mxu0 0.0
    %152 = vmatpush1.msra.mxu0 %v121
    %153 = vmatprep.subr.mxu0 0.0
    %154 = vmatpush1.msra.mxu0 %v120
    %155 = vmatprep.subr.mxu0 0.0
    %156 = vmatpush1.msra.mxu0 %v119
    %157 = vmatprep.subr.mxu0 0.0
    %158 = vmatpush1.msra.mxu0 %v118
    %159 = vmatprep.subr.mxu0 0.0
    %160 = vmatpush1.msra.mxu0 %v117
    %161 = vmatprep.subr.mxu0 0.0
    %162 = vmatpush1.msra.mxu0 %v116
    %163 = vmatprep.subr.mxu0 0.0
    %164 = vmatpush1.msra.mxu0 %v115
    %165 = vmatprep.subr.mxu0 0.0
    %166 = vmatpush1.msra.mxu0 %v114
    %167 = vmatprep.subr.mxu0 0.0
    %168 = vmatpush1.msra.mxu0 %v113
    %169 = vmatprep.subr.mxu0 0.0
    %170 = vmatpush2.msra.mxu0 0.0
    %171 = vmatprep.subr.mxu0 0.0
    %172 = vmatpush2.msra.mxu0 0.0
    %173 = vmatprep.subr.mxu0 0.0
    %174 = vmatpush2.msra.mxu0 0.0
    %175 = vmatprep.subr.mxu0 0.0
    %176 = vmatpush2.msra.mxu0 0.0
    %177 = vmatprep.subr.mxu0 0.0
    %178 = vmatpush2.msra.mxu0 0.0
    %179 = vmatprep.subr.mxu0 0.0
    %180 = vmatpush2.msra.mxu0 0.0
    %181 = vmatprep.subr.mxu0 0.0
    %182 = vmatpush2.msra.mxu0 0.0
    %183 = vmatprep.subr.mxu0 0.0
    %184 = vmatpush2.msra.mxu0 0.0
    %185 = vmatprep.subr.mxu0 0.0
    %186 = vmatpush2.msra.mxu0 0.0
    %187 = vmatprep.subr.mxu0 0.0
    %188 = vmatpush2.msra.mxu0 0.0
    %189 = vmatprep.subr.mxu0 0.0
    %190 = vmatpush2.msra.mxu0 0.0
    %191 = vmatprep.subr.mxu0 0.0
    %192 = vmatpush2.msra.mxu0 0.0
    %193 = vmatprep.subr.mxu0 0.0
    %194 = vmatpush2.msra.mxu0 0.0
    %195 = vmatprep.subr.mxu0 0.0
    %196 = vmatpush2.msra.mxu0 0.0
    %197 = vmatprep.subr.mxu0 0.0
    %198 = vmatpush2.msra.mxu0 0.0
    %199 = vmatprep.subr.mxu0 0.0
    %200 = vmatpush2.msra.mxu0 0.0
    %201 = vmatprep.mubr.f32.mxu0 0.0
    %202 = vmatmul.mubr.f32.gmra.mxu0 %v111
    %v203 = vpop.f32.mrf.mxu0
    %v204 = vadd.f32 %v135, %v203
    %v205 = vpop.f32.mrf.mxu0
    %206 = vdwg.mxu0
    %s207 = scalar_lea.vmem [#allocation2], 8
    %208 = vst [vmem:[%s207] sm:$0xff] %v204
    // Predicated region
    $region14: #{linear_mag_phase.1} parent=1 // pred_check
      _
    $region15: #{linear_mag_phase.1} parent=1 // pred_check_branch
      %210 = sbr.rel (0) target = $region17
    $region16: #{linear_mag_phase.1} parent=1 // pred_region
      %s212 = ssub.s32 256, 256
      %213 = vsyncadd [#allocation3], %s212
      %s214 = sshll.u32 [#allocation2], 4
      %s215 = int_to_ptr.vmem [resolvable:$true] %s214
      %220 = dma.vmem_to_hbm [thread:$0]  %s215, 256, %s3, [#allocation3], 128, 128, 8
    $region17: #{linear_mag_phase.1} parent=1 // pred_fallthru
      _
    // Predicated region
    $region18: #{linear_mag_phase.1} parent=1 // pred_check
      _
    $region19: #{linear_mag_phase.1} parent=1 // pred_check_branch
      %222 = sbr.rel (0) target = $region21
    $region20: #{linear_mag_phase.1} parent=1 // pred_region
      %223 = dma.done [#allocation3], 256
    $region21: #{linear_mag_phase.1} parent=1 // pred_fallthru
      _
    %224 = vsyncpa [#allocation3], 1

</llo_original>
